<compile_context>
chip_gen: v7x
topology: tpu7x:2x2x1
jax: 0.10.0
libtpu: 0.0.40
codegen_flags: <defaults>
</compile_context>

<pallas_src>
import functools

import jax
import jax.numpy as jnp
from jax.experimental import pallas as pl
from jax.experimental.pallas import tpu as pltpu


def _mult_alpha_conv1x1_kernel(x_ref, w_ref, b_ref, o_ref, *,
                               use_mxu, pack, cin, cout):
    """One (sample-block, spatial-tile): o = w @ x + b (alpha pre-folded).

    x_ref: VMEM (pack*Cin, ts)  `pack` samples stacked on the sublane axis
    w_ref: VMEM (Cout, Cin)     1x1-conv weight * alpha
    b_ref: VMEM (Cout, 1)       bias * alpha
    o_ref: VMEM (pack*Cout, ts) output block (lane-dense, unmasked stores)
    """
    x = x_ref[...]
    w = w_ref[...]
    b = b_ref[...].astype(jnp.float32)
    if use_mxu:
        # Large channel counts: contraction over Cin on the MXU (pack == 1).
        y = jax.lax.dot_general(
            w, x, (((1,), (0,)), ((), ())),
            preferred_element_type=jnp.float32)
        y = y + b
    else:
        # Tiny channel counts: pure-VPU formulation.  For each packed sample,
        # sum of broadcast outer-products (Cout,1) x (1,ts); the lane axis
        # stays dense and there is no padded systolic pass for a 4x4
        # contraction.  f32 accumulation kept explicit (v5e has no bf16 VPU).
        parts = []
        for p in range(pack):
            base = p * cin
            acc = (w[:, 0:1].astype(jnp.float32)
                   * x[base:base + 1, :].astype(jnp.float32))
            for ci in range(1, cin):
                acc = acc + (w[:, ci:ci + 1].astype(jnp.float32)
                             * x[base + ci:base + ci + 1, :].astype(jnp.float32))
            parts.append(acc + b)
        y = parts[0] if pack == 1 else jnp.concatenate(parts, axis=0)
    o_ref[...] = y.astype(o_ref.dtype)


def _round_down_128(v):
    return (v // 128) * 128


def _round_up(v, m):
    return ((v + m - 1) // m) * m


def _choose_spatial_tile(hw, rows_in, rows_out, w_elems, b_elems, itemsize,
                         batch_blocks, vmem_budget_bytes=24 * 1024 * 1024):
    """Pick (padded HW, spatial tile) under a conservative VMEM budget.

    Budget counts the double-buffered x/out tiles AND the double-buffered
    (grid-invariant) weight/bias blocks -- Pallas allocates 2 buffers for
    every BlockSpec'd operand by default.  24 MiB of tiles under an explicit
    32 MiB scoped limit is legal on v5e/v6e (128 MiB VMEM) and v7x (64 MiB).
    """
    hwp = _round_up(hw, 128)                       # lane-align (pad in wrapper)
    fixed = 2 * (w_elems + b_elems) * itemsize     # weight + bias, 2 buffers
    per_lane = 2 * (rows_in + rows_out) * itemsize  # x + out, 2 buffers each
    budget_ts = max(
        128, _round_down_128(max(vmem_budget_bytes - fixed, 0) // per_lane))
    # Overlap cap: aim for >= 4 total grid steps so DMA/compute overlap (and
    # v7x's 2nd TensorCore has work when the batch grid is 1 block), but do
    # not shrink below the ~512-lane HBM-roofline knee.
    spatial_steps_wanted = max(1, 4 // max(batch_blocks, 1))
    if spatial_steps_wanted > 1:
        cap = max(512, _round_down_128(hwp // spatial_steps_wanted))
    else:
        cap = hwp
    target = max(128, min(budget_ts, cap, hwp))
    # Largest lane-aligned divisor of hwp not exceeding target (128 always
    # divides hwp, so this terminates with an exact grid -- no tail masking).
    ts = target
    while ts > 128 and hwp % ts != 0:
        ts -= 128
    return hwp, ts


@jax.jit
def mult_alpha_conv1x1(x_nchw, weight, bias, alpha):
    """y = Conv2d_1x1(x) * alpha, fused in a single Pallas kernel.

    x_nchw: (N, Cin, H, W) float32
    weight: (Cout, Cin, 1, 1) float32   (PyTorch conv weight layout)
    bias:   (Cout,) float32
    alpha:  () float32 scalar parameter (MultAlpha blend)
    returns (N, Cout, H, W) float32
    """
    N, Cin, H, W = x_nchw.shape
    Cout = weight.shape[0]
    HW = H * W
    dtype = x_nchw.dtype
    itemsize = jnp.dtype(dtype).itemsize

    # Fold alpha into the affine conv parameters (exact in f32:
    # (Wx+b)*a = (aW)x + ab).  Fold is done in f32 regardless of storage dtype.
    alpha = jnp.asarray(alpha, jnp.float32)
    w2 = (weight.reshape(Cout, Cin).astype(jnp.float32) * alpha).astype(dtype)
    b2 = (bias.astype(jnp.float32) * alpha).astype(dtype).reshape(Cout, 1)

    use_mxu = min(Cin, Cout) >= 16  # VPU broadcast-sum path for tiny channels

    # Sublane packing (VPU path only): fold `pack` consecutive samples into
    # the sublane axis so small channel counts fill all 8 f32 sublanes of each
    # (8,128) tile instead of C of 8 -- halves HBM traffic at C=4.
    pack = 1
    if not use_mxu:
        for p in (8, 4, 2):
            if N % p == 0 and p * max(Cin, Cout) <= 8:
                pack = p
                break
    NB = N // pack
    rows_in, rows_out = pack * Cin, pack * Cout

    # Free row-major reshape: NCHW stays NCHW; spatial dims flattened onto the
    # lane axis, packed samples stacked on the sublane axis.
    # TODO(synk): confirm in HLO that these reshapes lower to bitcasts (no
    # relayout copy) for the deployment shapes; if not, accept (N, C, L) input.
    x3d = x_nchw.reshape(NB, rows_in, HW)

    HWp, ts = _choose_spatial_tile(
        HW, rows_in, rows_out, Cout * Cin, Cout, itemsize, batch_blocks=NB)
    if HWp != HW:
        # Lane-pad so every tile is a full multiple of 128 lanes (unmasked
        # stores); padded lanes are sliced off below.
        x3d = jnp.pad(x3d, ((0, 0), (0, 0), (0, HWp - HW)))

    kernel = functools.partial(
        _mult_alpha_conv1x1_kernel,
        use_mxu=use_mxu, pack=pack, cin=Cin, cout=Cout)

    out3d = pl.pallas_call(
        kernel,
        out_shape=jax.ShapeDtypeStruct((NB, rows_out, HWp), dtype),
        grid=(NB, HWp // ts),
        in_specs=[
            # (sample-block, packed channel slab, spatial tile); batch squeezed.
            pl.BlockSpec((None, rows_in, ts), lambda n, s: (n, 0, s)),
            # Grid-invariant weight / bias (accounted for in the VMEM budget).
            pl.BlockSpec((Cout, Cin), lambda n, s: (0, 0)),
            pl.BlockSpec((Cout, 1), lambda n, s: (0, 0)),
        ],
        out_specs=pl.BlockSpec((None, rows_out, ts), lambda n, s: (n, 0, s)),
        compiler_params=pltpu.CompilerParams(
            dimension_semantics=("parallel", "parallel"),
            vmem_limit_bytes=32 * 1024 * 1024,
        ),
    )(x3d, w2, b2)

    if HWp != HW:
        out3d = out3d[:, :, :HW]
    return out3d.reshape(N, Cout, H, W)


if __name__ == "__main__":
    # Small, deterministic shapes: batch=2, channels=4, spatial=16x16.
    N, C, H, W = 2, 4, 16, 16

    key = jax.random.PRNGKey(0)
    kx, kw, kb = jax.random.split(key, 3)
    x = jax.random.normal(kx, (N, C, H, W), dtype=jnp.float32)

    # Deterministic synthetic parameters (no checkpoint load).
    weight = jax.random.normal(kw, (C, C, 1, 1), dtype=jnp.float32) * 0.1
    bias = jax.random.normal(kb, (C,), dtype=jnp.float32) * 0.1
    # MultAlpha.__init__ default is init_blend=0.0; use 0.5 so the output is
    # non-trivial while keeping identical semantics (y = f(x) * alpha).
    alpha = jnp.float32(0.5)

    y = mult_alpha_conv1x1(x, weight, bias, alpha)
    y = jax.block_until_ready(y)

    # Pure-JAX reference in NCHW (no transposes anywhere).
    w2d = weight.reshape(C, C)
    ref = (jnp.einsum("oc,nchw->nohw", w2d, x)
           + bias[None, :, None, None]) * alpha

    assert y.shape == (N, C, H, W)
    assert jnp.allclose(y, ref, atol=1e-5, rtol=1e-5)

    print("KERNEL_OK")
</pallas_src>

<mosaic_0001>
module attributes {stable_mosaic.version = 11 : i64} {
  func.func @_mult_alpha_conv1x1_kernel(%arg0: i32, %arg1: i32, %arg2: memref<1x8x256xf32, #tpu.memory_space<vmem>>, %arg3: memref<4x4xf32, #tpu.memory_space<vmem>>, %arg4: memref<4x1xf32, #tpu.memory_space<vmem>>, %arg5: memref<1x8x256xf32, #tpu.memory_space<vmem>>) attributes {dimension_semantics = [#tpu.dimension_semantics<parallel>, #tpu.dimension_semantics<parallel>], iteration_bounds = array<i64: 1, 1>, scalar_prefetch = 0 : i64, scratch_operands = 0 : i64, tpu.core_type = #tpu.core_type<tc>, window_params = [{transform_indices = @transform_0, window_bounds = array<i64: 1, 8, 256>}, {pipeline_mode = #tpu.pipeline_mode<synchronous>, transform_indices = @transform_1, window_bounds = array<i64: 4, 4>}, {pipeline_mode = #tpu.pipeline_mode<synchronous>, transform_indices = @transform_2, window_bounds = array<i64: 4, 1>}, {transform_indices = @transform_3, window_bounds = array<i64: 1, 8, 256>}]} {
    %c0 = arith.constant 0 : index
    %c0_0 = arith.constant 0 : index
    %c0_1 = arith.constant 0 : index
    %0 = vector.load %arg2[%c0, %c0_0, %c0_1] : memref<1x8x256xf32, #tpu.memory_space<vmem>>, vector<1x8x256xf32>
    %1 = vector.shape_cast %0 : vector<1x8x256xf32> to vector<8x256xf32>
    %c0_2 = arith.constant 0 : index
    %c0_3 = arith.constant 0 : index
    %2 = vector.load %arg3[%c0_2, %c0_3] : memref<4x4xf32, #tpu.memory_space<vmem>>, vector<4x4xf32>
    %c0_4 = arith.constant 0 : index
    %c0_5 = arith.constant 0 : index
    %3 = vector.load %arg4[%c0_4, %c0_5] : memref<4x1xf32, #tpu.memory_space<vmem>>, vector<4x1xf32>
    %4 = vector.extract_strided_slice %2 {offsets = [0, 0], sizes = [4, 1], strides = [1, 1]} : vector<4x4xf32> to vector<4x1xf32>
    %5 = vector.extract_strided_slice %1 {offsets = [0, 0], sizes = [1, 256], strides = [1, 1]} : vector<8x256xf32> to vector<1x256xf32>
    %6 = vector.broadcast %4 : vector<4x1xf32> to vector<4x256xf32>
    %7 = vector.broadcast %5 : vector<1x256xf32> to vector<4x256xf32>
    %8 = arith.mulf %6, %7 : vector<4x256xf32>
    %9 = vector.extract_strided_slice %2 {offsets = [0, 1], sizes = [4, 1], strides = [1, 1]} : vector<4x4xf32> to vector<4x1xf32>
    %10 = vector.extract_strided_slice %1 {offsets = [1, 0], sizes = [1, 256], strides = [1, 1]} : vector<8x256xf32> to vector<1x256xf32>
    %11 = vector.broadcast %9 : vector<4x1xf32> to vector<4x256xf32>
    %12 = vector.broadcast %10 : vector<1x256xf32> to vector<4x256xf32>
    %13 = arith.mulf %11, %12 : vector<4x256xf32>
    %14 = arith.addf %8, %13 : vector<4x256xf32>
    %15 = vector.extract_strided_slice %2 {offsets = [0, 2], sizes = [4, 1], strides = [1, 1]} : vector<4x4xf32> to vector<4x1xf32>
    %16 = vector.extract_strided_slice %1 {offsets = [2, 0], sizes = [1, 256], strides = [1, 1]} : vector<8x256xf32> to vector<1x256xf32>
    %17 = vector.broadcast %15 : vector<4x1xf32> to vector<4x256xf32>
    %18 = vector.broadcast %16 : vector<1x256xf32> to vector<4x256xf32>
    %19 = arith.mulf %17, %18 : vector<4x256xf32>
    %20 = arith.addf %14, %19 : vector<4x256xf32>
    %21 = vector.extract_strided_slice %2 {offsets = [0, 3], sizes = [4, 1], strides = [1, 1]} : vector<4x4xf32> to vector<4x1xf32>
    %22 = vector.extract_strided_slice %1 {offsets = [3, 0], sizes = [1, 256], strides = [1, 1]} : vector<8x256xf32> to vector<1x256xf32>
    %23 = vector.broadcast %21 : vector<4x1xf32> to vector<4x256xf32>
    %24 = vector.broadcast %22 : vector<1x256xf32> to vector<4x256xf32>
    %25 = arith.mulf %23, %24 : vector<4x256xf32>
    %26 = arith.addf %20, %25 : vector<4x256xf32>
    %27 = vector.broadcast %3 : vector<4x1xf32> to vector<4x256xf32>
    %28 = arith.addf %26, %27 : vector<4x256xf32>
    %29 = vector.extract_strided_slice %2 {offsets = [0, 0], sizes = [4, 1], strides = [1, 1]} : vector<4x4xf32> to vector<4x1xf32>
    %30 = vector.extract_strided_slice %1 {offsets = [4, 0], sizes = [1, 256], strides = [1, 1]} : vector<8x256xf32> to vector<1x256xf32>
    %31 = vector.broadcast %29 : vector<4x1xf32> to vector<4x256xf32>
    %32 = vector.broadcast %30 : vector<1x256xf32> to vector<4x256xf32>
    %33 = arith.mulf %31, %32 : vector<4x256xf32>
    %34 = vector.extract_strided_slice %2 {offsets = [0, 1], sizes = [4, 1], strides = [1, 1]} : vector<4x4xf32> to vector<4x1xf32>
    %35 = vector.extract_strided_slice %1 {offsets = [5, 0], sizes = [1, 256], strides = [1, 1]} : vector<8x256xf32> to vector<1x256xf32>
    %36 = vector.broadcast %34 : vector<4x1xf32> to vector<4x256xf32>
    %37 = vector.broadcast %35 : vector<1x256xf32> to vector<4x256xf32>
    %38 = arith.mulf %36, %37 : vector<4x256xf32>
    %39 = arith.addf %33, %38 : vector<4x256xf32>
    %40 = vector.extract_strided_slice %2 {offsets = [0, 2], sizes = [4, 1], strides = [1, 1]} : vector<4x4xf32> to vector<4x1xf32>
    %41 = vector.extract_strided_slice %1 {offsets = [6, 0], sizes = [1, 256], strides = [1, 1]} : vector<8x256xf32> to vector<1x256xf32>
    %42 = vector.broadcast %40 : vector<4x1xf32> to vector<4x256xf32>
    %43 = vector.broadcast %41 : vector<1x256xf32> to vector<4x256xf32>
    %44 = arith.mulf %42, %43 : vector<4x256xf32>
    %45 = arith.addf %39, %44 : vector<4x256xf32>
    %46 = vector.extract_strided_slice %2 {offsets = [0, 3], sizes = [4, 1], strides = [1, 1]} : vector<4x4xf32> to vector<4x1xf32>
    %47 = vector.extract_strided_slice %1 {offsets = [7, 0], sizes = [1, 256], strides = [1, 1]} : vector<8x256xf32> to vector<1x256xf32>
    %48 = vector.broadcast %46 : vector<4x1xf32> to vector<4x256xf32>
    %49 = vector.broadcast %47 : vector<1x256xf32> to vector<4x256xf32>
    %50 = arith.mulf %48, %49 : vector<4x256xf32>
    %51 = arith.addf %45, %50 : vector<4x256xf32>
    %52 = vector.broadcast %3 : vector<4x1xf32> to vector<4x256xf32>
    %53 = arith.addf %51, %52 : vector<4x256xf32>
    %54 = tpu.concatenate %28, %53 in 0 : vector<4x256xf32>, vector<4x256xf32> -> vector<8x256xf32>
    %c0_6 = arith.constant 0 : index
    %c0_7 = arith.constant 0 : index
    %c0_8 = arith.constant 0 : index
    %55 = vector.load %arg5[%c0_6, %c0_7, %c0_8] : memref<1x8x256xf32, #tpu.memory_space<vmem>>, vector<1x8x256xf32>
    %56 = vector.shape_cast %55 : vector<1x8x256xf32> to vector<8x256xf32>
    %57 = vector.shape_cast %54 : vector<8x256xf32> to vector<1x8x256xf32>
    tpu.vector_store %arg5[%c0_6, %c0_7, %c0_8], %57 {strides = array<i32>} : memref<1x8x256xf32, #tpu.memory_space<vmem>>, vector<1x8x256xf32>,
    return
  }
  func.func @transform_0(%arg0: i32, %arg1: i32) -> (i32, i32, i32) {
    %c0_i32 = arith.constant 0 : i32
    %c0_i32_0 = arith.constant 0 : i32
    return %arg0, %c0_i32, %arg1 : i32, i32, i32
  }
  func.func @transform_1(%arg0: i32, %arg1: i32) -> (i32, i32) {
    %c0_i32 = arith.constant 0 : i32
    %c0_i32_0 = arith.constant 0 : i32
    %c0_i32_1 = arith.constant 0 : i32
    return %c0_i32, %c0_i32_0 : i32, i32
  }
  func.func @transform_2(%arg0: i32, %arg1: i32) -> (i32, i32) {
    %c0_i32 = arith.constant 0 : i32
    %c0_i32_0 = arith.constant 0 : i32
    %c0_i32_1 = arith.constant 0 : i32
    return %c0_i32, %c0_i32_0 : i32, i32
  }
  func.func @transform_3(%arg0: i32, %arg1: i32) -> (i32, i32, i32) {
    %c0_i32 = arith.constant 0 : i32
    %c0_i32_0 = arith.constant 0 : i32
    return %arg0, %c0_i32, %arg1 : i32, i32, i32
  }
}

</mosaic_0001>

<llo_original>
// kernel: mult_alpha_conv1x1.1
$region0: #{mult_alpha_conv1x1.1}
  #allocation0 [shape = 'u32[]', space=smem, size = 0x4, offset = 0x4, fixed_abs, tag = 'smem constant byte address 0x4 - core index']
  #allocation1 [shape = 'u32[144,128]{1,0:T(1,128)}', space=vmem, size = 0x12000, scoped, tag = 'internal scratch']
  %s0 = inlined_call_operand.vmem [shape: f32[1,8,256], index: 0, kind: input, shape index: {}]
  %s1 = inlined_call_operand.vmem [shape: f32[4,4], index: 1, kind: input, shape index: {}]
  %s2 = inlined_call_operand.vmem [shape: f32[4,1], index: 2, kind: input, shape index: {}]
  %s3 = inlined_call_operand.vmem [shape: f32[1,8,256], index: 3, kind: output, shape index: {}]
  %s4 = sld [smem:[#allocation0]]
  $region22: #{mult_alpha_conv1x1.1} parent=0
    _
  %s6 = ssub.s32 1, %s4
  %s7 = scalar_select 0, %s6, %s4
  // Predicated region
  $region2: #{mult_alpha_conv1x1.1} parent=0 // pred_check
    _
  $region3: #{mult_alpha_conv1x1.1} parent=0 // pred_check_branch
    %9 = sbr.rel (0) target = $region5
  $region4: #{mult_alpha_conv1x1.1} parent=0 // pred_region
    _
  $region5: #{mult_alpha_conv1x1.1} parent=0 // pred_fallthru
    _
  // Predicated region
  $region6: #{mult_alpha_conv1x1.1} parent=0 // pred_check
    _
  $region7: #{mult_alpha_conv1x1.1} parent=0 // pred_check_branch
    %11 = sbr.rel (0) target = $region9
  $region8: #{mult_alpha_conv1x1.1} parent=0 // pred_region
    _
  $region9: #{mult_alpha_conv1x1.1} parent=0 // pred_fallthru
    _
  // Predicated region
  $region10: #{mult_alpha_conv1x1.1} parent=0 // pred_check
    _
  $region11: #{mult_alpha_conv1x1.1} parent=0 // pred_check_branch
    %13 = sbr.rel (0) target = $region13
  $region12: #{mult_alpha_conv1x1.1} parent=0 // pred_region
    _
  $region13: #{mult_alpha_conv1x1.1} parent=0 // pred_fallthru
    _
  %v14 = vld [vmem:[%s0] sm:$0xff]
  %v15 = vld [vmem:[%s0 + $0x8] sm:$0xff]
  %v16 = vld [vmem:[%s1] sm:$0xf]
  %v17 = vld [vmem:[%s2] sm:$0xf]
  %19 = vset.pattern.permute.xlu0 0
  %20 = vperm.xlu0 %19, %v16
  %v21 = vpop.permute.xlu0 %20
  %v23 = vlaneseq
  %v24 = vshrl.u32 %v23, 7
  %v25 = vsub.s32 0, %v24
  %v26 = vrot.slane %v14, %v25
  %v27 = vlaneseq
  %v28 = vshrl.u32 %v27, 7
  %v29 = vsub.s32 0, %v28
  %v30 = vrot.slane %v15, %v29
  %v31 = vmul.f32 %v21, %v26
  %v32 = vmul.f32 %v21, %v30
  %33 = vset.pattern.permute.xlu0 1
  %34 = vperm.xlu0 %33, %v16
  %v35 = vpop.permute.xlu0 %34
  %v37 = vlaneseq
  %v38 = vshrl.u32 %v37, 7
  %v39 = vsub.s32 1, %v38
  %v40 = vrot.slane %v14, %v39
  %v41 = vlaneseq
  %v42 = vshrl.u32 %v41, 7
  %v43 = vsub.s32 1, %v42
  %v44 = vrot.slane %v15, %v43
  %v45 = vmul.f32 %v35, %v40
  %v46 = vmul.f32 %v35, %v44
  %v47 = vadd.f32 %v31, %v45
  %v48 = vadd.f32 %v32, %v46
  %49 = vset.pattern.permute.xlu0 2
  %50 = vperm.xlu0 %49, %v16
  %v51 = vpop.permute.xlu0 %50
  %v53 = vlaneseq
  %v54 = vshrl.u32 %v53, 7
  %v55 = vsub.s32 2, %v54
  %v56 = vrot.slane %v14, %v55
  %v57 = vlaneseq
  %v58 = vshrl.u32 %v57, 7
  %v59 = vsub.s32 2, %v58
  %v60 = vrot.slane %v15, %v59
  %v61 = vmul.f32 %v51, %v56
  %v62 = vmul.f32 %v51, %v60
  %v63 = vadd.f32 %v47, %v61
  %v64 = vadd.f32 %v48, %v62
  %65 = vset.pattern.permute.xlu0 3
  %66 = vperm.xlu0 %65, %v16
  %v67 = vpop.permute.xlu0 %66
  %v69 = vlaneseq
  %v70 = vshrl.u32 %v69, 7
  %v71 = vsub.s32 3, %v70
  %v72 = vrot.slane %v14, %v71
  %v73 = vlaneseq
  %v74 = vshrl.u32 %v73, 7
  %v75 = vsub.s32 3, %v74
  %v76 = vrot.slane %v15, %v75
  %v77 = vmul.f32 %v67, %v72
  %v78 = vmul.f32 %v67, %v76
  %v79 = vadd.f32 %v63, %v77
  %v80 = vadd.f32 %v64, %v78
  %82 = vset.pattern.permute.xlu0 0
  %83 = vperm.xlu0 %82, %v17
  %v84 = vpop.permute.xlu0 %83
  %v86 = vadd.f32 %v79, %v84
  %v87 = vadd.f32 %v80, %v84
  %v88 = vlaneseq
  %v89 = vshrl.u32 %v88, 7
  %v90 = vsub.s32 4, %v89
  %v91 = vrot.slane %v14, %v90
  %v92 = vlaneseq
  %v93 = vshrl.u32 %v92, 7
  %v94 = vsub.s32 4, %v93
  %v95 = vrot.slane %v15, %v94
  %v96 = vmul.f32 %v21, %v91
  %v97 = vmul.f32 %v21, %v95
  %v98 = vlaneseq
  %v99 = vshrl.u32 %v98, 7
  %v100 = vsub.s32 5, %v99
  %v101 = vrot.slane %v14, %v100
  %v102 = vlaneseq
  %v103 = vshrl.u32 %v102, 7
  %v104 = vsub.s32 5, %v103
  %v105 = vrot.slane %v15, %v104
  %v106 = vmul.f32 %v35, %v101
  %v107 = vmul.f32 %v35, %v105
  %v108 = vadd.f32 %v96, %v106
  %v109 = vadd.f32 %v97, %v107
  %v110 = vlaneseq
  %v111 = vshrl.u32 %v110, 7
  %v112 = vsub.s32 6, %v111
  %v113 = vrot.slane %v14, %v112
  %v114 = vlaneseq
  %v115 = vshrl.u32 %v114, 7
  %v116 = vsub.s32 6, %v115
  %v117 = vrot.slane %v15, %v116
  %v118 = vmul.f32 %v51, %v113
  %v119 = vmul.f32 %v51, %v117
  %v120 = vadd.f32 %v108, %v118
  %v121 = vadd.f32 %v109, %v119
  %v122 = vlaneseq
  %v123 = vshrl.u32 %v122, 7
  %v124 = vsub.s32 7, %v123
  %v125 = vrot.slane %v14, %v124
  %v126 = vlaneseq
  %v127 = vshrl.u32 %v126, 7
  %v128 = vsub.s32 7, %v127
  %v129 = vrot.slane %v15, %v128
  %v130 = vmul.f32 %v67, %v125
  %v131 = vmul.f32 %v67, %v129
  %v132 = vadd.f32 %v120, %v130
  %v133 = vadd.f32 %v121, %v131
  %v134 = vadd.f32 %v132, %v84
  %v135 = vadd.f32 %v133, %v84
  %v138 = vrot.slane %v134, 4
  %v139 = vrot.slane %v135, 4
  %vm142 = vcmask 1043456
  %v143 = vsel %vm142, %v86, %v138
  %v144 = vsel %vm142, %v87, %v139
  %145 = vst [vmem:[%s3] sm:$0xff] %v143
  %146 = vst [vmem:[%s3 + $0x8] sm:$0xff] %v144
  // Predicated region
  $region14: #{mult_alpha_conv1x1.1} parent=0 // pred_check
    _
  $region15: #{mult_alpha_conv1x1.1} parent=0 // pred_check_branch
    %148 = sbr.rel (0) target = $region17
  $region16: #{mult_alpha_conv1x1.1} parent=0 // pred_region
    _
  $region17: #{mult_alpha_conv1x1.1} parent=0 // pred_fallthru
    _
  // Predicated region
  $region18: #{mult_alpha_conv1x1.1} parent=0 // pred_check
    _
  $region19: #{mult_alpha_conv1x1.1} parent=0 // pred_check_branch
    %150 = sbr.rel (0) target = $region21
  $region20: #{mult_alpha_conv1x1.1} parent=0 // pred_region
    _
  $region21: #{mult_alpha_conv1x1.1} parent=0 // pred_fallthru
    _

</llo_original>
